<compile_context>
chip_gen: v5e
topology: v5e:2x2
jax: 0.10.0
libtpu: 0.0.40
codegen_flags: <defaults>
</compile_context>

<pallas_src>
import functools
import jax
import jax.numpy as jnp
from jax.experimental import pallas as pl
from jax.experimental.pallas import tpu as pltpu

_LANE = 128
_MiB = 1024 * 1024


def _round_up(a: int, b: int) -> int:
    return (a + b - 1) // b * b


# ----------------------------------------------------------------------------- kernel
def post_transformation_kernel(x_ref, w1_ref, b1_ref, w2_ref, b2_ref, o_ref):
    # linear1 on the MXU in the weight dtype (bf16 by default), f32 accumulation.
    x = x_ref[...].astype(w1_ref.dtype)
    h = jnp.dot(x, w1_ref[...], preferred_element_type=jnp.float32) + b1_ref[...]
    # relu_
    h = jnp.maximum(h, 0.0)
    # linear2
    y = jnp.dot(h.astype(w2_ref.dtype), w2_ref[...],
                preferred_element_type=jnp.float32) + b2_ref[...]
    # x / ||x||_2 over the last dim (no eps, matching torch.norm semantics: an all-zero
    # row yields inf/NaN exactly like the PyTorch module).  rsqrt lowers to the EUP and
    # the row-sum to the XLU, keeping the epilogue off the VALU critical path.  Padded
    # lanes of y are exactly 0 (zero-padded W2 columns / b2), so the norm over the padded
    # width equals the true norm.
    inv_norm = jax.lax.rsqrt(jnp.sum(y * y, axis=-1, keepdims=True))
    o_ref[...] = (y * inv_norm).astype(o_ref.dtype)


# ------------------------------------------------------------------- chip-aware sizing
def _chip_limits():
    """Returns (vmem budget in bytes for this kernel, MXU M height)."""
    kind = ""
    try:
        kind = jax.devices()[0].device_kind.lower()
    except Exception:
        pass
    if "v6" in kind:                       # v6e: 128 MiB VMEM, 256x256 MXU
        return 96 * _MiB, 256
    if "v5" in kind or "v4" in kind:       # v5e/v5p/v4: 128 MiB VMEM, 128x128 MXU
        return 96 * _MiB, 128
    # v7x (64 MiB VMEM per TC) or unknown: be conservative, leave Mosaic headroom.
    return 48 * _MiB, 256


def _vmem_footprint(tm, Cin, Hp, wbytes, xbytes, obytes):
    return (2 * tm * Cin * xbytes      # x tile, double-buffered
            + 2 * tm * Hp * obytes     # out tile, double-buffered
            + Cin * Hp * wbytes        # w1, resident & single-buffered
            + Hp * Hp * wbytes         # w2, resident & single-buffered
            + 2 * Hp * 4               # biases
            + 2 * tm * Hp * 4)         # f32 intermediates (h, y)


def _pick_tm(N, Cin, Hp, wbytes, xbytes, obytes, budget, mxu_m):
    # Large row tiles on 128 MiB chips (single TC, HBM-bound -> ~85% roofline at 512);
    # 256 on v7x so two grid steps appear naturally once N >= 512 (2 TensorCores).
    tm_target = 512 if budget >= 96 * _MiB else 256
    if N <= tm_target:
        tm = _round_up(N, 8)           # tiny-N path: a single grid step
    else:
        tm = _round_up(tm_target, mxu_m)
    # Shrink against the VMEM budget if the resident weights + tiles do not fit.
    while _vmem_footprint(tm, Cin, Hp, wbytes, xbytes, obytes) > budget and tm > 8:
        tm = max(8, _round_up(tm // 2, 8))
    return tm


# --------------------------------------------------------------------- parameter prep
def prepare_post_transformation_params(w1, b1, w2, b2, *, matmul_dtype=jnp.bfloat16):
    """Pad/cast parameters once (hoist out of the hot path; cache the result).

    w1: [Cin, H], b1: [H], w2: [H, H], b2: [H]   (weights stored [in, out]).
    Hidden/output width is zero-padded to a multiple of 128 for lane-dense stores;
    padded lanes produce exact zeros so the L2 norm is unchanged.
    """
    Cin, H = w1.shape
    Hp = _round_up(H, _LANE)
    w1_p = jnp.zeros((Cin, Hp), matmul_dtype).at[:, :H].set(w1.astype(matmul_dtype))
    w2_p = jnp.zeros((Hp, Hp), matmul_dtype).at[:H, :H].set(w2.astype(matmul_dtype))
    b1_p = jnp.zeros((1, Hp), jnp.float32).at[0, :H].set(b1.astype(jnp.float32))
    b2_p = jnp.zeros((1, Hp), jnp.float32).at[0, :H].set(b2.astype(jnp.float32))
    return (w1_p, b1_p, w2_p, b2_p, H)


# -------------------------------------------------------------------------- entry point
def post_transformation(x, params, *, unpad=True):
    """Fused linear -> relu_ -> linear -> L2-normalize.

    x      : [N, Cin]
    params : output of prepare_post_transformation_params()
    unpad  : if False, return the padded [N_pad, Hp] buffer (padded lanes are exactly 0)
             and skip the extra HBM pass of the output slice.
    """
    w1_p, b1_p, w2_p, b2_p, H = params
    N, Cin = x.shape
    Hp = w1_p.shape[1]
    out_dtype = x.dtype
    wbytes = jnp.dtype(w1_p.dtype).itemsize
    xbytes = jnp.dtype(x.dtype).itemsize
    obytes = jnp.dtype(out_dtype).itemsize

    budget, mxu_m = _chip_limits()
    # TODO(synk): for very large H (Hp >= ~3072) on v7x, tile Hp on a second grid axis with
    # an f32 accumulator + pl.when finalize instead of keeping the full (Hp, Hp) w2 resident.
    tm = _pick_tm(N, Cin, Hp, wbytes, xbytes, obytes, budget, mxu_m)
    N_pad = _round_up(N, tm)
    x_p = x if N_pad == N else jnp.pad(x, ((0, N_pad - N), (0, 0)))

    footprint = _vmem_footprint(tm, Cin, Hp, wbytes, xbytes, obytes)
    vmem_limit = int(min(budget, max(16 * _MiB, 2 * footprint + 4 * _MiB)))

    cost = pl.CostEstimate(
        flops=2 * N_pad * (Cin * Hp + Hp * Hp),
        transcendentals=N_pad,
        bytes_accessed=(N_pad * Cin * xbytes
                        + (Cin * Hp + Hp * Hp) * wbytes
                        + 2 * Hp * 4
                        + N_pad * Hp * obytes),
    )

    # Weight/bias blocks never change block index -> single-buffer them; x/out tiles keep
    # the default double-buffering so loads/stores overlap compute across grid steps.
    resident = functools.partial(pl.BlockSpec, pipeline_mode=pl.Buffered(1))

    out = pl.pallas_call(
        post_transformation_kernel,
        out_shape=jax.ShapeDtypeStruct((N_pad, Hp), out_dtype),
        grid_spec=pl.GridSpec(
            grid=(N_pad // tm,),
            in_specs=[
                pl.BlockSpec((tm, Cin), lambda i: (i, 0)),        # x rows (pipelined)
                resident((Cin, Hp), lambda i: (0, 0)),            # w1 (resident)
                resident((1, Hp), lambda i: (0, 0)),              # b1
                resident((Hp, Hp), lambda i: (0, 0)),             # w2 (resident)
                resident((1, Hp), lambda i: (0, 0)),              # b2
            ],
            out_specs=pl.BlockSpec((tm, Hp), lambda i: (i, 0)),
        ),
        compiler_params=pltpu.CompilerParams(
            dimension_semantics=("parallel",),
            vmem_limit_bytes=vmem_limit,
        ),
        cost_estimate=cost,
    )(x_p, w1_p, b1_p, w2_p, b2_p)

    if not unpad:
        return out
    if Hp == H:
        return out if N_pad == N else out[:N]
    return out[:N, :H]


# --------------------------------------------------------------------------------- demo
def _xavier_normal(key, fan_in, fan_out):
    std = (2.0 / (fan_in + fan_out)) ** 0.5
    # returned in [in, out] layout (transposed w.r.t. PyTorch's [out, in])
    return std * jax.random.normal(key, (fan_in, fan_out), dtype=jnp.float32)


if __name__ == "__main__":
    N, IN_CH, HID = 16, 16, 32

    key = jax.random.PRNGKey(0)
    kx, kw1, kb1, kw2, kb2 = jax.random.split(key, 5)

    x = jax.random.normal(kx, (N, IN_CH), dtype=jnp.float32)

    # deterministic parameter init (xavier-normal weights, small uniform biases)
    w1 = _xavier_normal(kw1, IN_CH, HID)
    b1 = jax.random.uniform(kb1, (HID,), dtype=jnp.float32,
                            minval=-1.0 / IN_CH ** 0.5, maxval=1.0 / IN_CH ** 0.5)
    w2 = _xavier_normal(kw2, HID, HID)
    b2 = jax.random.uniform(kb2, (HID,), dtype=jnp.float32,
                            minval=-1.0 / HID ** 0.5, maxval=1.0 / HID ** 0.5)

    # Pad/cast weights once (hoisted out of the per-call path).
    params = prepare_post_transformation_params(w1, b1, w2, b2)

    out = post_transformation(x, params)
    out = jax.block_until_ready(out)

    # pure-JAX f32 reference; kernel matmuls run in bf16, hence loose tolerance.
    h_ref = jnp.maximum(x @ w1 + b1, 0.0)
    y_ref = h_ref @ w2 + b2
    y_ref = y_ref / jnp.linalg.norm(y_ref, axis=-1, keepdims=True)
    assert out.shape == y_ref.shape
    err = float(jnp.max(jnp.abs(out - y_ref)))
    assert jnp.allclose(out, y_ref, atol=2e-2, rtol=2e-2), err

    print("KERNEL_OK")
</pallas_src>

<mosaic_0001>
module attributes {stable_mosaic.version = 11 : i64} {
  func.func @post_transformation_kernel(%arg0: i32, %arg1: memref<16x16xf32, #tpu.memory_space<vmem>>, %arg2: memref<16x128xbf16, #tpu.memory_space<vmem>>, %arg3: memref<1x128xf32, #tpu.memory_space<vmem>>, %arg4: memref<128x128xbf16, #tpu.memory_space<vmem>>, %arg5: memref<1x128xf32, #tpu.memory_space<vmem>>, %arg6: memref<16x128xf32, #tpu.memory_space<vmem>>) attributes {dimension_semantics = [#tpu.dimension_semantics<parallel>], iteration_bounds = array<i64: 1>, scalar_prefetch = 0 : i64, scratch_operands = 0 : i64, tpu.core_type = #tpu.core_type<tc>, window_params = [{transform_indices = @transform_0, window_bounds = array<i64: 16, 16>}, {pipeline_mode = #tpu.pipeline_mode<synchronous>, transform_indices = @transform_1, window_bounds = array<i64: 16, 128>}, {pipeline_mode = #tpu.pipeline_mode<synchronous>, transform_indices = @transform_2, window_bounds = array<i64: 1, 128>}, {pipeline_mode = #tpu.pipeline_mode<synchronous>, transform_indices = @transform_3, window_bounds = array<i64: 128, 128>}, {pipeline_mode = #tpu.pipeline_mode<synchronous>, transform_indices = @transform_4, window_bounds = array<i64: 1, 128>}, {transform_indices = @transform_5, window_bounds = array<i64: 16, 128>}]} {
    %c0 = arith.constant 0 : index
    %c0_0 = arith.constant 0 : index
    %0 = vector.load %arg1[%c0, %c0_0] : memref<16x16xf32, #tpu.memory_space<vmem>>, vector<16x16xf32>
    %1 = arith.truncf %0 : vector<16x16xf32> to vector<16x16xbf16>
    %c0_1 = arith.constant 0 : index
    %c0_2 = arith.constant 0 : index
    %2 = vector.load %arg2[%c0_1, %c0_2] : memref<16x128xbf16, #tpu.memory_space<vmem>>, vector<16x128xbf16>
    %cst = arith.constant dense<0.000000e+00> : vector<16x128xf32>
    %3 = tpu.matmul %1, %2, %cst {dimension_numbers = #tpu.dot_dimension_numbers<[1], [0], [0], [1], [0, 0, 1, 1], [], []>} : vector<16x16xbf16>, vector<16x128xbf16>, vector<16x128xf32> -> vector<16x128xf32>
    %c0_3 = arith.constant 0 : index
    %c0_4 = arith.constant 0 : index
    %4 = vector.load %arg3[%c0_3, %c0_4] : memref<1x128xf32, #tpu.memory_space<vmem>>, vector<1x128xf32>
    %5 = vector.broadcast %4 : vector<1x128xf32> to vector<16x128xf32>
    %6 = arith.addf %3, %5 : vector<16x128xf32>
    %cst_5 = arith.constant 0.000000e+00 : f32
    %7 = vector.broadcast %cst_5 : f32 to vector<16x128xf32>
    %8 = arith.maximumf %6, %7 : vector<16x128xf32>
    %9 = arith.truncf %8 : vector<16x128xf32> to vector<16x128xbf16>
    %c0_6 = arith.constant 0 : index
    %c0_7 = arith.constant 0 : index
    %10 = vector.load %arg4[%c0_6, %c0_7] : memref<128x128xbf16, #tpu.memory_space<vmem>>, vector<128x128xbf16>
    %cst_8 = arith.constant dense<0.000000e+00> : vector<16x128xf32>
    %11 = tpu.matmul %9, %10, %cst_8 {dimension_numbers = #tpu.dot_dimension_numbers<[1], [0], [0], [1], [0, 0, 1, 1], [], []>} : vector<16x128xbf16>, vector<128x128xbf16>, vector<16x128xf32> -> vector<16x128xf32>
    %c0_9 = arith.constant 0 : index
    %c0_10 = arith.constant 0 : index
    %12 = vector.load %arg5[%c0_9, %c0_10] : memref<1x128xf32, #tpu.memory_space<vmem>>, vector<1x128xf32>
    %13 = vector.broadcast %12 : vector<1x128xf32> to vector<16x128xf32>
    %14 = arith.addf %11, %13 : vector<16x128xf32>
    %15 = arith.mulf %14, %14 : vector<16x128xf32>
    %cst_11 = arith.constant dense<0.000000e+00> : vector<16xf32>
    %16 = vector.multi_reduction <add>, %15, %cst_11 [1] : vector<16x128xf32> to vector<16xf32>
    %17 = vector.shape_cast %16 : vector<16xf32> to vector<16x1xf32>
    %18 = math.rsqrt %17 : vector<16x1xf32>
    %19 = vector.broadcast %18 : vector<16x1xf32> to vector<16x128xf32>
    %20 = arith.mulf %14, %19 : vector<16x128xf32>
    %c0_12 = arith.constant 0 : index
    %c0_13 = arith.constant 0 : index
    %21 = vector.load %arg6[%c0_12, %c0_13] : memref<16x128xf32, #tpu.memory_space<vmem>>, vector<16x128xf32>
    tpu.vector_store %arg6[%c0_12, %c0_13], %20 {strides = array<i32>} : memref<16x128xf32, #tpu.memory_space<vmem>>, vector<16x128xf32>,
    return
  }
  func.func @transform_0(%arg0: i32) -> (i32, i32) {
    %c0_i32 = arith.constant 0 : i32
    %c0_i32_0 = arith.constant 0 : i32
    return %arg0, %c0_i32 : i32, i32
  }
  func.func @transform_1(%arg0: i32) -> (i32, i32) {
    %c0_i32 = arith.constant 0 : i32
    %c0_i32_0 = arith.constant 0 : i32
    %c0_i32_1 = arith.constant 0 : i32
    return %c0_i32, %c0_i32_0 : i32, i32
  }
  func.func @transform_2(%arg0: i32) -> (i32, i32) {
    %c0_i32 = arith.constant 0 : i32
    %c0_i32_0 = arith.constant 0 : i32
    %c0_i32_1 = arith.constant 0 : i32
    return %c0_i32, %c0_i32_0 : i32, i32
  }
  func.func @transform_3(%arg0: i32) -> (i32, i32) {
    %c0_i32 = arith.constant 0 : i32
    %c0_i32_0 = arith.constant 0 : i32
    %c0_i32_1 = arith.constant 0 : i32
    return %c0_i32, %c0_i32_0 : i32, i32
  }
  func.func @transform_4(%arg0: i32) -> (i32, i32) {
    %c0_i32 = arith.constant 0 : i32
    %c0_i32_0 = arith.constant 0 : i32
    %c0_i32_1 = arith.constant 0 : i32
    return %c0_i32, %c0_i32_0 : i32, i32
  }
  func.func @transform_5(%arg0: i32) -> (i32, i32) {
    %c0_i32 = arith.constant 0 : i32
    %c0_i32_0 = arith.constant 0 : i32
    return %arg0, %c0_i32 : i32, i32
  }
}

</mosaic_0001>

<llo_original>
// kernel: tpu_custom_call.1
$region0: #{tpu_custom_call.1}
  #allocation0 [shape = 'u32[]', space=smem, size = 0x4, offset = 0x4, fixed_abs, tag = 'smem constant byte address 0x4 - core index']
  #allocation1 [shape = 'u32[72,128]{1,0:T(1,128)}', space=vmem, size = 0x9000, scoped, tag = 'internal scratch']
  %s0 = inlined_call_operand.hbm [shape: f32[16,16], index: 0, kind: input, shape index: {}]
  %s1 = inlined_call_operand.hbm [shape: bf16[16,128], index: 1, kind: input, shape index: {}]
  %s2 = inlined_call_operand.vmem [shape: f32[1,128], index: 2, kind: input, shape index: {}]
  %s3 = inlined_call_operand.hbm [shape: bf16[128,128], index: 3, kind: input, shape index: {}]
  %s4 = inlined_call_operand.vmem [shape: f32[1,128], index: 4, kind: input, shape index: {}]
  %s5 = inlined_call_operand.hbm [shape: f32[16,128], index: 5, kind: output, shape index: {}]
  %s6 = sld [smem:[#allocation0]]
  $region42: #{tpu_custom_call.1} parent=0
    _
  %s8 = ssub.s32 1, %s6
  %s9 = scalar_select 0, %s8, %s6
  $region1: #{tpu_custom_call.1} parent=0
    #allocation2 [shape = 'u8[8192]{0}', space=vmem, size = 0x2000, scoped, tag = 'input window, operand 0, single buffered']
    #allocation3 [shape = 's32[1]{0}', space=sflag, size = 0x4, scoped, tag = 'scoped memory for tpu_custom_call.1']
    #allocation4 [shape = 's32[1]{0}', space=sflag, size = 0x4, scoped, tag = 'scoped memory for tpu_custom_call.1']
    #allocation5 [shape = 'u8[4096]{0}', space=vmem, size = 0x1000, scoped, tag = 'input window, operand 1, single buffered']
    #allocation6 [shape = 's32[1]{0}', space=sflag, size = 0x4, scoped, tag = 'scoped memory for tpu_custom_call.1']
    #allocation7 [shape = 'u8[32768]{0}', space=vmem, size = 0x8000, scoped, tag = 'input window, operand 3, single buffered']
    #allocation8 [shape = 'u8[8192]{0}', space=vmem, size = 0x2000, scoped, tag = 'output window, operand 0, single buffered']
    %10 = vsyncpa [#allocation3], 0
    %11 = vsyncpa [#allocation6], 0
    %12 = vsyncpa [#allocation4], 0
    // Predicated region
    $region2: #{tpu_custom_call.1} parent=1 // pred_check
      _
    $region3: #{tpu_custom_call.1} parent=1 // pred_check_branch
      %14 = sbr.rel (0) target = $region5
    $region4: #{tpu_custom_call.1} parent=1 // pred_region
      %16 = vsyncadd [#allocation3], 0
      %s17 = sshll.u32 %s0, 4
      %s18 = int_to_ptr.hbm [resolvable:$true] %s17
      %s19 = sshll.u32 [#allocation2], 4
      %s20 = int_to_ptr.vmem [resolvable:$true] %s19
      %25 = dma.hbm_to_vmem [thread:$0]  %s18, 256, %s20, [#allocation3], 128, 128, 8
    $region5: #{tpu_custom_call.1} parent=1 // pred_fallthru
      _
    // Predicated region
    $region6: #{tpu_custom_call.1} parent=1 // pred_check
      _
    $region7: #{tpu_custom_call.1} parent=1 // pred_check_branch
      %27 = sbr.rel (0) target = $region9
    $region8: #{tpu_custom_call.1} parent=1 // pred_region
      %29 = vsyncadd [#allocation6], 0
      %s30 = sshll.u32 %s1, 4
      %s31 = int_to_ptr.hbm [resolvable:$true] %s30
      %s32 = sshll.u32 [#allocation5], 4
      %s33 = int_to_ptr.vmem [resolvable:$true] %s32
      %38 = dma.hbm_to_vmem [thread:$0]  %s31, 128, %s33, [#allocation6], 64, 64, 4
    $region9: #{tpu_custom_call.1} parent=1 // pred_fallthru
      _
    // Predicated region
    $region10: #{tpu_custom_call.1} parent=1 // pred_check
      _
    $region11: #{tpu_custom_call.1} parent=1 // pred_check_branch
      %40 = sbr.rel (0) target = $region13
    $region12: #{tpu_custom_call.1} parent=1 // pred_region
      _
    $region13: #{tpu_custom_call.1} parent=1 // pred_fallthru
      _
    // Predicated region
    $region14: #{tpu_custom_call.1} parent=1 // pred_check
      _
    $region15: #{tpu_custom_call.1} parent=1 // pred_check_branch
      %42 = sbr.rel (0) target = $region17
    $region16: #{tpu_custom_call.1} parent=1 // pred_region
      %44 = vsyncadd [#allocation6], 0
      %s45 = sshll.u32 %s3, 4
      %s46 = int_to_ptr.hbm [resolvable:$true] %s45
      %s47 = sshll.u32 [#allocation7], 4
      %s48 = int_to_ptr.vmem [resolvable:$true] %s47
      %53 = dma.hbm_to_vmem [thread:$0]  %s46, 1024, %s48, [#allocation6], 64, 64, 4
    $region17: #{tpu_custom_call.1} parent=1 // pred_fallthru
      _
    // Predicated region
    $region18: #{tpu_custom_call.1} parent=1 // pred_check
      _
    $region19: #{tpu_custom_call.1} parent=1 // pred_check_branch
      %55 = sbr.rel (0) target = $region21
    $region20: #{tpu_custom_call.1} parent=1 // pred_region
      _
    $region21: #{tpu_custom_call.1} parent=1 // pred_fallthru
      _
    // Predicated region
    $region22: #{tpu_custom_call.1} parent=1 // pred_check
      _
    $region23: #{tpu_custom_call.1} parent=1 // pred_check_branch
      %57 = sbr.rel (0) target = $region25
    $region24: #{tpu_custom_call.1} parent=1 // pred_region
      %59 = dma.done [#allocation3], 256
    $region25: #{tpu_custom_call.1} parent=1 // pred_fallthru
      _
    // Predicated region
    $region26: #{tpu_custom_call.1} parent=1 // pred_check
      _
    $region27: #{tpu_custom_call.1} parent=1 // pred_check_branch
      %61 = sbr.rel (0) target = $region29
    $region28: #{tpu_custom_call.1} parent=1 // pred_region
      %63 = dma.done [#allocation6], 128
    $region29: #{tpu_custom_call.1} parent=1 // pred_fallthru
      _
    // Predicated region
    $region30: #{tpu_custom_call.1} parent=1 // pred_check
      _
    $region31: #{tpu_custom_call.1} parent=1 // pred_check_branch
      %65 = sbr.rel (0) target = $region33
    $region32: #{tpu_custom_call.1} parent=1 // pred_region
      %67 = dma.done [#allocation6], 1024
    $region33: #{tpu_custom_call.1} parent=1 // pred_fallthru
      _
    %v69 = vld [vmem:[#allocation2] sm:$0xff]
    %v70 = vld [vmem:[#allocation2 + $0x8] sm:$0xff]
    %v71 = vpack.c.bf16 %v70, %v69
    %v72 = vld [vmem:[#allocation5] sm:$0xf]
    %v73 = vld [vmem:[#allocation5 + $0x4] sm:$0xf]
    %v74 = vld [vmem:[%s2] sm:$0x1]
    %v76 = vperm.slane %v74, 0
    %v80 = vunpack.c.l.b16 %v72
    %v81 = vunpack.c.l.b16 %v73
    %v82 = vpack.c.b16 %v81, %v80
    %vm84 = vcmask 130048
    %v86 = vsel %vm84, %v71, 0
    %88 = vmatpush.bf16.msra.mxu0 0
    %89 = vmatpush.bf16.msra.mxu0 0
    %90 = vmatpush.bf16.msra.mxu0 0
    %91 = vmatpush.bf16.msra.mxu0 0
    %92 = vmatpush.bf16.msra.mxu0 0
    %93 = vmatpush.bf16.msra.mxu0 0
    %94 = vmatpush.bf16.msra.mxu0 0
    %95 = vmatpush.bf16.msra.mxu0 %v82
    %96 = vmatmul.bf16.gmra.mxu0 %v86
    %v97 = vpop.f32.mrf.mxu0
    %v98 = vadd.f32 %v76, %v97
    %v99 = vpop.f32.mrf.mxu0
    %v100 = vadd.f32 %v76, %v99
    %101 = vdwg.mxu0
    %v102 = vmax.f32 %v98, 0.0
    %v103 = vmax.f32 %v100, 0.0
    %v104 = vpack.c.bf16 %v103, %v102
    %v105 = vld [vmem:[#allocation7] sm:$0xf]
    %v106 = vld [vmem:[#allocation7 + $0x4] sm:$0xf]
    %v107 = vld [vmem:[#allocation7 + $0x8] sm:$0xf]
    %v108 = vld [vmem:[#allocation7 + $0xc] sm:$0xf]
    %v109 = vld [vmem:[#allocation7 + $0x10] sm:$0xf]
    %v110 = vld [vmem:[#allocation7 + $0x14] sm:$0xf]
    %v111 = vld [vmem:[#allocation7 + $0x18] sm:$0xf]
    %v112 = vld [vmem:[#allocation7 + $0x1c] sm:$0xf]
    %v113 = vld [vmem:[#allocation7 + $0x20] sm:$0xf]
    %v114 = vld [vmem:[#allocation7 + $0x24] sm:$0xf]
    %v115 = vld [vmem:[#allocation7 + $0x28] sm:$0xf]
    %v116 = vld [vmem:[#allocation7 + $0x2c] sm:$0xf]
    %v117 = vld [vmem:[#allocation7 + $0x30] sm:$0xf]
    %v118 = vld [vmem:[#allocation7 + $0x34] sm:$0xf]
    %v119 = vld [vmem:[#allocation7 + $0x38] sm:$0xf]
    %v120 = vld [vmem:[#allocation7 + $0x3c] sm:$0xf]
    %v121 = vld [vmem:[%s4] sm:$0x1]
    %v123 = vperm.slane %v121, 0
    %v141 = vunpack.c.l.b16 %v105
    %v142 = vunpack.c.l.b16 %v106
    %v143 = vunpack.c.l.b16 %v107
    %v144 = vunpack.c.l.b16 %v108
    %v145 = vunpack.c.l.b16 %v109
    %v146 = vunpack.c.l.b16 %v110
    %v147 = vunpack.c.l.b16 %v111
    %v148 = vunpack.c.l.b16 %v112
    %v149 = vunpack.c.l.b16 %v113
    %v150 = vunpack.c.l.b16 %v114
    %v151 = vunpack.c.l.b16 %v115
    %v152 = vunpack.c.l.b16 %v116
    %v153 = vunpack.c.l.b16 %v117
    %v154 = vunpack.c.l.b16 %v118
    %v155 = vunpack.c.l.b16 %v119
    %v156 = vunpack.c.l.b16 %v120
    %v157 = vpack.c.b16 %v142, %v141
    %v158 = vpack.c.b16 %v144, %v143
    %v159 = vpack.c.b16 %v146, %v145
    %v160 = vpack.c.b16 %v148, %v147
    %v161 = vpack.c.b16 %v150, %v149
    %v162 = vpack.c.b16 %v152, %v151
    %v163 = vpack.c.b16 %v154, %v153
    %v164 = vpack.c.b16 %v156, %v155
    %173 = vmatpush.bf16.msra.mxu0 %v164
    %174 = vmatpush.bf16.msra.mxu0 %v163
    %175 = vmatpush.bf16.msra.mxu0 %v162
    %176 = vmatpush.bf16.msra.mxu0 %v161
    %177 = vmatpush.bf16.msra.mxu0 %v160
    %178 = vmatpush.bf16.msra.mxu0 %v159
    %179 = vmatpush.bf16.msra.mxu0 %v158
    %180 = vmatpush.bf16.msra.mxu0 %v157
    %181 = vmatmul.bf16.gmra.mxu0 %v104
    %v182 = vpop.f32.mrf.mxu0
    %v183 = vadd.f32 %v123, %v182
    %v184 = vpop.f32.mrf.mxu0
    %v185 = vadd.f32 %v123, %v184
    %186 = vdwg.mxu0
    %v187 = vmul.f32 %v183, %v183
    %v188 = vmul.f32 %v185, %v185
    %189 = vadd.xlane.f32.xlu0 %v187
    %v190 = vpop.xlane.xlu0 %189
    %191 = vadd.xlane.f32.xlu0 %v188
    %v192 = vpop.xlane.xlu0 %191
    %v193 = vrsqrt.pop %v190
    %v194 = vmul.f32 %v193, %v190
    %v195 = vmul.f32 %v194, %v193
    %v196 = vmul.f32 0.5, %v195
    %v197 = vsub.f32 1.5, %v196
    %v198 = vmul.f32 %v193, %v197
    %vm199 = vweird.f32 %v190
    %vm200 = vweird.f32 %v193
    %vm201 = vmor %vm199, %vm200
    %v202 = vsel %vm201, %v193, %v198
    %v203 = vrsqrt.pop %v192
    %v204 = vmul.f32 %v203, %v192
    %v205 = vmul.f32 %v204, %v203
    %v206 = vmul.f32 0.5, %v205
    %v207 = vsub.f32 1.5, %v206
    %v208 = vmul.f32 %v203, %v207
    %vm209 = vweird.f32 %v192
    %vm210 = vweird.f32 %v203
    %vm211 = vmor %vm209, %vm210
    %v212 = vsel %vm211, %v203, %v208
    %v213 = vmul.f32 %v183, %v202
    %v214 = vmul.f32 %v185, %v212
    %215 = vst [vmem:[#allocation8] sm:$0xff] %v213
    %216 = vst [vmem:[#allocation8 + $0x8] sm:$0xff] %v214
    // Predicated region
    $region34: #{tpu_custom_call.1} parent=1 // pred_check
      _
    $region35: #{tpu_custom_call.1} parent=1 // pred_check_branch
      %218 = sbr.rel (0) target = $region37
    $region36: #{tpu_custom_call.1} parent=1 // pred_region
      %220 = vsyncadd [#allocation4], 0
      %s221 = sshll.u32 [#allocation8], 4
      %s222 = int_to_ptr.vmem [resolvable:$true] %s221
      %s223 = sshll.u32 %s5, 4
      %s224 = int_to_ptr.hbm [resolvable:$true] %s223
      %229 = dma.vmem_to_hbm [thread:$0]  %s222, 256, %s224, [#allocation4], 128, 128, 8
    $region37: #{tpu_custom_call.1} parent=1 // pred_fallthru
      _
    // Predicated region
    $region38: #{tpu_custom_call.1} parent=1 // pred_check
      _
    $region39: #{tpu_custom_call.1} parent=1 // pred_check_branch
      %231 = sbr.rel (0) target = $region41
    $region40: #{tpu_custom_call.1} parent=1 // pred_region
      %233 = dma.done [#allocation4], 256
    $region41: #{tpu_custom_call.1} parent=1 // pred_fallthru
      _
    %234 = vsyncpa [#allocation3], 1
    %235 = vsyncpa [#allocation6], 1
    %236 = vsyncpa [#allocation4], 1

</llo_original>
